<compile_context>
chip_gen: v7x
topology: tpu7x:2x2x1
jax: 0.10.0
libtpu: 0.0.40
codegen_flags: <defaults>
</compile_context>

<pallas_src>
import jax
import jax.numpy as jnp
from jax.experimental import pallas as pl
from jax.experimental.pallas import tpu as pltpu


# Block = (512, 1024) f32 = 2 MiB; with in + out double-buffering ~8 MiB VMEM.
_COLS = 1024
_TILE_ROWS = 512


def _neg_scale_kernel(coeff_ref, g_ref, o_ref):
    # grad_in = -coeff * grad_out   (coeff is a runtime scalar read from SMEM)
    c = coeff_ref[0]
    o_ref[...] = (g_ref[...] * (-c)).astype(o_ref.dtype)


def _reverse_grad(g, coeff):
    """Compute -coeff * g with a tiled Pallas kernel, for arbitrary-shape g."""
    shape, dtype = g.shape, g.dtype
    total = g.size
    if total == 0:
        return g

    # Lane-dense 2D slab: wide, multiple-of-128 last dim.
    cols = _COLS if total >= _COLS else 128
    rows_needed = -(-total // cols)
    tile_rows = min(_TILE_ROWS, ((rows_needed + 7) // 8) * 8)
    rows = -(-rows_needed // tile_rows) * tile_rows

    flat = g.reshape(-1)
    pad = rows * cols - total
    if pad:
        flat = jnp.pad(flat, (0, pad))
    g2d = flat.reshape(rows, cols)

    coeff_arr = jnp.asarray(coeff, dtype=jnp.float32).reshape((1,))

    out2d = pl.pallas_call(
        _neg_scale_kernel,
        out_shape=jax.ShapeDtypeStruct((rows, cols), dtype),
        grid_spec=pltpu.PrefetchScalarGridSpec(
            num_scalar_prefetch=0,
            grid=(rows // tile_rows,),
            in_specs=[
                pl.BlockSpec(memory_space=pltpu.MemorySpace.SMEM),   # coeff scalar
                pl.BlockSpec((tile_rows, cols), lambda i: (i, 0)),   # grad tiles
            ],
            out_specs=pl.BlockSpec((tile_rows, cols), lambda i: (i, 0)),
        ),
        compiler_params=pltpu.CompilerParams(
            dimension_semantics=("parallel",),  # shard rows across v7x's 2 TCs
        ),
        # In-place negate-and-scale: reuse the gradient buffer for the output.
        input_output_aliases={1: 0},
    )(coeff_arr, g2d)

    out = out2d.reshape(-1)
    if pad:
        out = out[:total]
    return out.reshape(shape)


@jax.custom_vjp
def _grl(x, coeff):
    # Forward is an exact identity (no kernel, no HBM round-trip).
    return x


def _grl_fwd(x, coeff):
    return x, coeff


def _grl_bwd(coeff, g):
    # One cotangent per primal input: reversed/scaled grad for x, zero for coeff.
    return _reverse_grad(g, coeff), jnp.zeros_like(coeff)


_grl.defvjp(_grl_fwd, _grl_bwd)


def gradient_reverse_layer(x, coeff=1.0):
    """GradientReverseLayer: forward identity, backward multiplies grad by -coeff."""
    coeff = jnp.asarray(coeff, dtype=jnp.float32)
    return _grl(x, coeff)


if __name__ == "__main__":
    key = jax.random.PRNGKey(0)
    # NCHW input, small shape consistent with a typical conv feature map.
    x = jax.random.normal(key, (2, 4, 16, 16), dtype=jnp.float32)
    coeff = 1.0

    # Forward: exact identity (pure passthrough).
    y = jax.block_until_ready(gradient_reverse_layer(x, coeff))
    assert y.shape == x.shape and y.dtype == x.dtype
    assert bool(jnp.all(y == x))

    # Run the backward Pallas kernel directly once.
    g = jnp.full_like(x, 2.0)
    gi = jax.block_until_ready(_reverse_grad(g, jnp.asarray(coeff, jnp.float32)))
    assert bool(jnp.allclose(gi, -coeff * g))

    # Full autodiff path: grad_input = -coeff * upstream gradient.
    loss_fn = lambda t: jnp.sum(gradient_reverse_layer(t, coeff) * 2.0)
    grad = jax.block_until_ready(jax.grad(loss_fn)(x))
    assert bool(jnp.allclose(grad, -coeff * 2.0 * jnp.ones_like(x)))

    # Traced, non-unit coefficient under jit (no recompile per coeff value).
    grad_fn = jax.jit(
        jax.grad(lambda t, c: jnp.sum(gradient_reverse_layer(t, c) * 3.0))
    )
    grad2 = jax.block_until_ready(grad_fn(x, jnp.asarray(0.5, jnp.float32)))
    assert bool(jnp.allclose(grad2, -0.5 * 3.0 * jnp.ones_like(x)))

    print("KERNEL_OK")
</pallas_src>

<mosaic_0001>
module attributes {stable_mosaic.version = 11 : i64} {
  func.func @_neg_scale_kernel(%arg0: i32, %arg1: memref<1xf32, #tpu.memory_space<smem>>, %arg2: memref<8x1024xf32, #tpu.memory_space<vmem>>, %arg3: memref<8x1024xf32, #tpu.memory_space<vmem>>) attributes {dimension_semantics = [#tpu.dimension_semantics<parallel>], iteration_bounds = array<i64: 1>, scalar_prefetch = 0 : i64, scratch_operands = 0 : i64, tpu.core_type = #tpu.core_type<tc>, window_params = [{transform_indices = @transform_0, window_bounds = array<i64: 1>}, {transform_indices = @transform_1, window_bounds = array<i64: 8, 1024>}, {transform_indices = @transform_2, window_bounds = array<i64: 8, 1024>}]} {
    %c0 = arith.constant 0 : index
    %0 = memref.load %arg1[%c0] : memref<1xf32, #tpu.memory_space<smem>>
    %c0_0 = arith.constant 0 : index
    %c0_1 = arith.constant 0 : index
    %1 = vector.load %arg2[%c0_0, %c0_1] : memref<8x1024xf32, #tpu.memory_space<vmem>>, vector<8x1024xf32>
    %cst = arith.constant 0.000000e+00 : f32
    %2 = arith.subf %cst, %0 : f32
    %3 = vector.broadcast %2 : f32 to vector<8x1024xf32>
    %4 = arith.mulf %1, %3 : vector<8x1024xf32>
    %c0_2 = arith.constant 0 : index
    %c0_3 = arith.constant 0 : index
    %5 = vector.load %arg3[%c0_2, %c0_3] : memref<8x1024xf32, #tpu.memory_space<vmem>>, vector<8x1024xf32>
    tpu.vector_store %arg3[%c0_2, %c0_3], %4 {strides = array<i32>} : memref<8x1024xf32, #tpu.memory_space<vmem>>, vector<8x1024xf32>,
    return
  }
  func.func @transform_0(%arg0: i32) -> i32 {
    %c0_i32 = arith.constant 0 : i32
    %c0_i32_0 = arith.constant 0 : i32
    return %c0_i32 : i32
  }
  func.func @transform_1(%arg0: i32) -> (i32, i32) {
    %c0_i32 = arith.constant 0 : i32
    %c0_i32_0 = arith.constant 0 : i32
    return %arg0, %c0_i32 : i32, i32
  }
  func.func @transform_2(%arg0: i32) -> (i32, i32) {
    %c0_i32 = arith.constant 0 : i32
    %c0_i32_0 = arith.constant 0 : i32
    return %arg0, %c0_i32 : i32, i32
  }
}

</mosaic_0001>

<llo_original>
// kernel: tpu_custom_call.1
$region0: #{tpu_custom_call.1}
  #allocation0 [shape = 'u32[]', space=smem, size = 0x4, offset = 0x4, fixed_abs, tag = 'smem constant byte address 0x4 - core index']
  #allocation1 [shape = 'u32[144,128]{1,0:T(1,128)}', space=vmem, size = 0x12000, scoped, tag = 'internal scratch']
  #allocation2 [shape = 'f32[1]{0:T(128)S(6)}', space=smem, size = 0x200, scoped, tag = 'scoped memory for tpu_custom_call.1']
  %s0 = inlined_call_operand.<no memory space> [shape: f32[1], index: 0, kind: input, shape index: {}]
  %s1 = inlined_call_operand.hbm [shape: f32[8,1024], index: 1, kind: input, shape index: {}, may-alias: {1,2}]
  %s2 = inlined_call_operand.hbm [shape: f32[8,1024], index: 2, kind: output, shape index: {}, may-alias: {1,2}]
  %s3 = sld [smem:[#allocation0]]
  $region22: #{tpu_custom_call.1} parent=0
    _
  %s5 = ssub.s32 1, %s3
  %s6 = scalar_select 0, %s5, %s3
  %7 = sst [smem:[#allocation2]] %s0
  $region1: #{tpu_custom_call.1} parent=0
    #allocation3 [shape = 'u8[32768]{0}', space=vmem, size = 0x8000, scoped, tag = 'input window, operand 1, single buffered']
    #allocation4 [shape = 's32[1]{0}', space=sflag, size = 0x4, scoped, tag = 'scoped memory for tpu_custom_call.1']
    #allocation5 [shape = 's32[1]{0}', space=sflag, size = 0x4, scoped, tag = 'scoped memory for tpu_custom_call.1']
    #allocation6 [shape = 'u8[32768]{0}', space=vmem, size = 0x8000, scoped, tag = 'output window, operand 0, single buffered']
    %8 = vsyncpa [#allocation4], 0
    %9 = vsyncpa [#allocation5], 0
    // Predicated region
    $region2: #{tpu_custom_call.1} parent=1 // pred_check
      _
    $region3: #{tpu_custom_call.1} parent=1 // pred_check_branch
      %11 = sbr.rel (0) target = $region5
    $region4: #{tpu_custom_call.1} parent=1 // pred_region
      _
    $region5: #{tpu_custom_call.1} parent=1 // pred_fallthru
      _
    // Predicated region
    $region6: #{tpu_custom_call.1} parent=1 // pred_check
      _
    $region7: #{tpu_custom_call.1} parent=1 // pred_check_branch
      %13 = sbr.rel (0) target = $region9
    $region8: #{tpu_custom_call.1} parent=1 // pred_region
      %s15 = ssub.s32 1024, 1024
      %16 = vsyncadd [#allocation4], %s15
      %s18 = sshll.u32 [#allocation3], 4
      %s19 = int_to_ptr.vmem [resolvable:$true] %s18
      %21 = dma.hbm_to_vmem [thread:$0]  %s1, 1024, %s19, [#allocation4]
    $region9: #{tpu_custom_call.1} parent=1 // pred_fallthru
      _
    // Predicated region
    $region10: #{tpu_custom_call.1} parent=1 // pred_check
      _
    $region11: #{tpu_custom_call.1} parent=1 // pred_check_branch
      %23 = sbr.rel (0) target = $region13
    $region12: #{tpu_custom_call.1} parent=1 // pred_region
      %24 = dma.done [#allocation4], 1024
    $region13: #{tpu_custom_call.1} parent=1 // pred_fallthru
      _
    %s25 = sld [smem:[#allocation2]]
    %v26 = vld [vmem:[#allocation3] sm:$0xff]
    %v27 = vld [vmem:[#allocation3 + $0x8] sm:$0xff]
    %v28 = vld [vmem:[#allocation3 + $0x10] sm:$0xff]
    %v29 = vld [vmem:[#allocation3 + $0x18] sm:$0xff]
    %v30 = vld [vmem:[#allocation3 + $0x20] sm:$0xff]
    %v31 = vld [vmem:[#allocation3 + $0x28] sm:$0xff]
    %v32 = vld [vmem:[#allocation3 + $0x30] sm:$0xff]
    %v33 = vld [vmem:[#allocation3 + $0x38] sm:$0xff]
    %s34 = ssub.f32 0.0, %s25
    %v35 = vstv %s34
    %v36 = vmul.f32 %v26, %v35
    %v37 = vmul.f32 %v27, %v35
    %v38 = vmul.f32 %v28, %v35
    %v39 = vmul.f32 %v29, %v35
    %v40 = vmul.f32 %v30, %v35
    %v41 = vmul.f32 %v31, %v35
    %v42 = vmul.f32 %v32, %v35
    %v43 = vmul.f32 %v33, %v35
    %44 = vst [vmem:[#allocation6] sm:$0xff] %v36
    %45 = vst [vmem:[#allocation6 + $0x8] sm:$0xff] %v37
    %46 = vst [vmem:[#allocation6 + $0x10] sm:$0xff] %v38
    %47 = vst [vmem:[#allocation6 + $0x18] sm:$0xff] %v39
    %48 = vst [vmem:[#allocation6 + $0x20] sm:$0xff] %v40
    %49 = vst [vmem:[#allocation6 + $0x28] sm:$0xff] %v41
    %50 = vst [vmem:[#allocation6 + $0x30] sm:$0xff] %v42
    %51 = vst [vmem:[#allocation6 + $0x38] sm:$0xff] %v43
    // Predicated region
    $region14: #{tpu_custom_call.1} parent=1 // pred_check
      _
    $region15: #{tpu_custom_call.1} parent=1 // pred_check_branch
      %53 = sbr.rel (0) target = $region17
    $region16: #{tpu_custom_call.1} parent=1 // pred_region
      %s55 = ssub.s32 1024, 1024
      %56 = vsyncadd [#allocation5], %s55
      %s58 = sshll.u32 [#allocation6], 4
      %s59 = int_to_ptr.vmem [resolvable:$true] %s58
      %61 = dma.vmem_to_hbm [thread:$0]  %s59, 1024, %s2, [#allocation5]
    $region17: #{tpu_custom_call.1} parent=1 // pred_fallthru
      _
    // Predicated region
    $region18: #{tpu_custom_call.1} parent=1 // pred_check
      _
    $region19: #{tpu_custom_call.1} parent=1 // pred_check_branch
      %63 = sbr.rel (0) target = $region21
    $region20: #{tpu_custom_call.1} parent=1 // pred_region
      %64 = dma.done [#allocation5], 1024
    $region21: #{tpu_custom_call.1} parent=1 // pred_fallthru
      _
    %65 = vsyncpa [#allocation4], 1
    %66 = vsyncpa [#allocation5], 1

</llo_original>
